<compile_context>
chip_gen: v6e
topology: v6e:2x2x1
jax: 0.10.0
libtpu: 0.0.40
codegen_flags: <defaults>
</compile_context>

<pallas_src>
import jax
import jax.numpy as jnp
from jax.experimental import pallas as pl
from jax.experimental.pallas import tpu as pltpu


def lstm_last_hidden_kernel(x_ref, params_ref, out_ref):
    """Runs the full LSTM recurrence in VMEM and writes the final hidden state.

    x_ref:      (B*T, F)    batch-major flattened inputs: row (b*T + t) == seq[b, t, :]
    params_ref: (F+H+1, 4H) fused [W_ih^T ; W_hh^T ; (b_ih + b_hh)], f32
    out_ref:    (B, H)      final hidden state h_T
    """
    B, H = out_ref.shape
    BT, F = x_ref.shape
    T = BT // B

    p = params_ref[...]                         # (F+H+1, 4H) f32, one DMA
    wih = p[0:F, :].astype(jnp.bfloat16)        # (F, 4H)  MXU operand -> bf16
    whh = p[F:F + H, :].astype(jnp.bfloat16)    # (H, 4H)  MXU operand -> bf16
    b = p[F + H:F + H + 1, :]                   # (1, 4H)  bias stays f32

    # Hoisted input projection: ONE bf16 MXU matmul (f32 accumulate) + ONE bias
    # broadcast for every timestep.  Row (b*T + t) of gates_x is the input
    # contribution of sample b at step t.  Only h @ W_hh stays on the serial path.
    x = x_ref[...].astype(jnp.bfloat16)                                   # (B*T, F)
    gates_x = jnp.dot(x, wih, preferred_element_type=jnp.float32) + b     # (B*T, 4H) f32

    def step_block(t):
        # Static row slices + concat; independent of h/c, so this XLU/VPU work
        # overlaps with the serial per-step MXU matmul.
        rows = [gates_x[bb * T + t: bb * T + t + 1, :] for bb in range(B)]
        return rows[0] if B == 1 else jnp.concatenate(rows, axis=0)       # (B, 4H)

    # Recurrent state in f32 (portable to v5e).  (B, H) occupies one sublane/lane
    # padded vreg; the MXU pads M to 8 internally, so no explicit batch padding.
    h = jnp.zeros((B, H), jnp.float32)
    c = jnp.zeros((B, H), jnp.float32)

    # Fully unrolled recurrence (T is small and static; the wrapper guards it).
    # Serial per-step critical path: bf16 (B,H)@(H,4H) MXU matmul -> add ->
    # 2 full-vreg EUP transcendentals -> VPU c/h update -> tanh(c).
    for t in range(T):
        rec = jnp.dot(h.astype(jnp.bfloat16), whh,
                      preferred_element_type=jnp.float32)                 # (B, 4H) f32
        gates = step_block(t) + rec                                       # (B, 4H) f32

        sig = jax.nn.sigmoid(gates)   # one full-vreg EUP pass: sigma over [i|f|g|o]
        tah = jnp.tanh(gates)         # one full-vreg EUP pass: tanh  over [i|f|g|o]
        i_s = sig[:, 0 * H:1 * H]     # PyTorch gate order: i, f, g, o
        f_s = sig[:, 1 * H:2 * H]
        g_t = tah[:, 2 * H:3 * H]
        o_s = sig[:, 3 * H:4 * H]

        c = f_s * c + i_s * g_t
        h = o_s * jnp.tanh(c)

    out_ref[...] = h.astype(out_ref.dtype)


def make_series_embedding_params(w_ih, w_hh, b_ih, b_hh):
    """Pre-transpose and fuse the LSTM parameters ONCE at parameter-load time.

    PyTorch layout: w_ih (4H, F), w_hh (4H, H), b_ih (4H,), b_hh (4H,), gate order
    (i, f, g, o).  Returns a single (F+H+1, 4H) f32 slab [W_ih^T ; W_hh^T ; b_ih+b_hh]
    so the kernel needs 2 input DMAs (x, params) instead of 4."""
    wih_t = jnp.transpose(w_ih).astype(jnp.float32)          # (F, 4H)
    whh_t = jnp.transpose(w_hh).astype(jnp.float32)          # (H, 4H)
    b = (b_ih + b_hh).astype(jnp.float32).reshape(1, -1)     # (1, 4H)
    return jnp.concatenate([wih_t, whh_t, b], axis=0)        # (F+H+1, 4H)


@jax.jit
def series_embedding_forward(seq, params):
    """seq: (B, T, F) float32; params from make_series_embedding_params.
    Returns (B, H) -- the final hidden state (== PyTorch h_n.squeeze(0))."""
    B, T, F = seq.shape
    H4 = params.shape[1]
    H = H4 // 4
    assert params.shape[0] == F + H + 1, "params slab does not match (F, H)"

    # FREE metadata-only reshape (no transpose fusion, no extra HBM round-trip).
    x2d = seq.reshape(B * T, F)

    # Whole-problem-in-VMEM design: guard + compiler limit derived from the same
    # estimate (inputs + params + output + gates_x intermediate, with headroom).
    # TODO(synk): for long T, tile T on an "arbitrary" grid axis with h/c carried in
    # VMEM scratch (budget per generation: v7x has 64 MiB VMEM vs 128 on v5e/v6e),
    # and switch the unrolled loop to lax.fori_loop.
    assert T <= 32, "recurrence is fully unrolled; use fori_loop / T-tiling for long seqs"
    approx_vmem_bytes = 4 * (B * T * F + params.shape[0] * H4 + B * H + 2 * B * T * H4)
    assert approx_vmem_bytes < 4 * 1024 * 1024, (
        "input too large for the untiled VMEM-resident kernel; tile over T")
    vmem_limit = int(max(4 * approx_vmem_bytes, 4 * 1024 * 1024))

    vmem_spec = pl.BlockSpec(memory_space=pltpu.MemorySpace.VMEM)
    # Grid-less call (single TensorCore).  On v7x, a ('parallel',) batch-chunk grid
    # axis would use both TCs once the caller provides a large enough batch.
    return pl.pallas_call(
        lstm_last_hidden_kernel,
        out_shape=jax.ShapeDtypeStruct((B, H), seq.dtype),
        in_specs=[vmem_spec, vmem_spec],
        out_specs=vmem_spec,
        compiler_params=pltpu.CompilerParams(vmem_limit_bytes=vmem_limit),
    )(x2d, params)


if __name__ == "__main__":
    # Small shapes consistent with the module's forward:
    #   feature_size=8, embedding_size=32, batch=2, seq_len=8
    B, T, F, H = 2, 8, 8, 32

    key = jax.random.PRNGKey(0)
    k_seq, k_wih, k_whh, k_bih, k_bhh = jax.random.split(key, 5)

    # Deterministic PyTorch-style uniform(-1/sqrt(H), 1/sqrt(H)) init.
    bound = 1.0 / jnp.sqrt(jnp.float32(H))
    seq = jax.random.normal(k_seq, (B, T, F), dtype=jnp.float32)
    w_ih = jax.random.uniform(k_wih, (4 * H, F), jnp.float32, -bound, bound)
    w_hh = jax.random.uniform(k_whh, (4 * H, H), jnp.float32, -bound, bound)
    b_ih = jax.random.uniform(k_bih, (4 * H,), jnp.float32, -bound, bound)
    b_hh = jax.random.uniform(k_bhh, (4 * H,), jnp.float32, -bound, bound)

    params = make_series_embedding_params(w_ih, w_hh, b_ih, b_hh)

    out = series_embedding_forward(seq, params)
    out = jax.block_until_ready(out)

    # Pure-JAX f32 reference of the same LSTM recurrence.
    def ref_lstm(seq, w_ih, w_hh, b_ih, b_hh):
        h = jnp.zeros((B, H), jnp.float32)
        c = jnp.zeros((B, H), jnp.float32)
        for t in range(T):
            gates = seq[:, t, :] @ w_ih.T + h @ w_hh.T + b_ih + b_hh
            i = jax.nn.sigmoid(gates[:, :H])
            f = jax.nn.sigmoid(gates[:, H:2 * H])
            g = jnp.tanh(gates[:, 2 * H:3 * H])
            o = jax.nn.sigmoid(gates[:, 3 * H:])
            c = f * c + i * g
            h = o * jnp.tanh(c)
        return h

    ref = ref_lstm(seq, w_ih, w_hh, b_ih, b_hh)
    assert out.shape == (B, H)
    # bf16 MXU operands (f32 accumulation) => looser tolerance than pure f32.
    max_err = float(jnp.max(jnp.abs(out - ref)))
    assert max_err < 3e-2, f"max abs err vs f32 reference too large: {max_err}"
    print("KERNEL_OK")
</pallas_src>

<mosaic_0001>
module attributes {stable_mosaic.version = 11 : i64} {
  func.func @lstm_last_hidden_kernel(%arg0: memref<16x8xf32, #tpu.memory_space<vmem>>, %arg1: memref<41x128xf32, #tpu.memory_space<vmem>>, %arg2: memref<2x32xf32, #tpu.memory_space<vmem>>) attributes {dimension_semantics = [], scalar_prefetch = 0 : i64, scratch_operands = 0 : i64, tpu.core_type = #tpu.core_type<tc>} {
    %c0 = arith.constant 0 : index
    %c0_0 = arith.constant 0 : index
    %0 = vector.load %arg1[%c0, %c0_0] : memref<41x128xf32, #tpu.memory_space<vmem>>, vector<41x128xf32>
    %1 = vector.extract_strided_slice %0 {offsets = [0, 0], sizes = [8, 128], strides = [1, 1]} : vector<41x128xf32> to vector<8x128xf32>
    %2 = arith.truncf %1 : vector<8x128xf32> to vector<8x128xbf16>
    %3 = vector.extract_strided_slice %0 {offsets = [8, 0], sizes = [32, 128], strides = [1, 1]} : vector<41x128xf32> to vector<32x128xf32>
    %4 = arith.truncf %3 : vector<32x128xf32> to vector<32x128xbf16>
    %5 = vector.extract_strided_slice %0 {offsets = [40, 0], sizes = [1, 128], strides = [1, 1]} : vector<41x128xf32> to vector<1x128xf32>
    %c0_1 = arith.constant 0 : index
    %c0_2 = arith.constant 0 : index
    %6 = vector.load %arg0[%c0_1, %c0_2] : memref<16x8xf32, #tpu.memory_space<vmem>>, vector<16x8xf32>
    %7 = arith.truncf %6 : vector<16x8xf32> to vector<16x8xbf16>
    %cst = arith.constant dense<0.000000e+00> : vector<16x128xf32>
    %8 = tpu.matmul %7, %2, %cst {dimension_numbers = #tpu.dot_dimension_numbers<[1], [0], [0], [1], [0, 0, 1, 1], [], []>} : vector<16x8xbf16>, vector<8x128xbf16>, vector<16x128xf32> -> vector<16x128xf32>
    %9 = vector.broadcast %5 : vector<1x128xf32> to vector<16x128xf32>
    %10 = arith.addf %8, %9 : vector<16x128xf32>
    %cst_3 = arith.constant 0.000000e+00 : f32
    %11 = vector.broadcast %cst_3 : f32 to vector<2x32xf32>
    %cst_4 = arith.constant 0.000000e+00 : f32
    %12 = vector.broadcast %cst_4 : f32 to vector<2x32xf32>
    %13 = arith.truncf %11 : vector<2x32xf32> to vector<2x32xbf16>
    %cst_5 = arith.constant dense<0.000000e+00> : vector<2x128xf32>
    %14 = tpu.matmul %13, %4, %cst_5 {dimension_numbers = #tpu.dot_dimension_numbers<[1], [0], [0], [1], [0, 0, 1, 1], [], []>} : vector<2x32xbf16>, vector<32x128xbf16>, vector<2x128xf32> -> vector<2x128xf32>
    %15 = vector.extract_strided_slice %10 {offsets = [0, 0], sizes = [1, 128], strides = [1, 1]} : vector<16x128xf32> to vector<1x128xf32>
    %16 = vector.extract_strided_slice %10 {offsets = [8, 0], sizes = [1, 128], strides = [1, 1]} : vector<16x128xf32> to vector<1x128xf32>
    %17 = tpu.concatenate %15, %16 in 0 : vector<1x128xf32>, vector<1x128xf32> -> vector<2x128xf32>
    %18 = arith.addf %17, %14 : vector<2x128xf32>
    %19 = arith.negf %18 : vector<2x128xf32>
    %20 = math.exp %19 : vector<2x128xf32>
    %cst_6 = arith.constant 1.000000e+00 : f32
    %21 = vector.broadcast %cst_6 : f32 to vector<2x128xf32>
    %22 = arith.addf %21, %20 : vector<2x128xf32>
    %23 = arith.divf %21, %22 : vector<2x128xf32>
    %24 = math.tanh %18 : vector<2x128xf32>
    %25 = vector.extract_strided_slice %23 {offsets = [0, 0], sizes = [2, 32], strides = [1, 1]} : vector<2x128xf32> to vector<2x32xf32>
    %26 = vector.extract_strided_slice %23 {offsets = [0, 32], sizes = [2, 32], strides = [1, 1]} : vector<2x128xf32> to vector<2x32xf32>
    %27 = vector.extract_strided_slice %24 {offsets = [0, 64], sizes = [2, 32], strides = [1, 1]} : vector<2x128xf32> to vector<2x32xf32>
    %28 = vector.extract_strided_slice %23 {offsets = [0, 96], sizes = [2, 32], strides = [1, 1]} : vector<2x128xf32> to vector<2x32xf32>
    %29 = arith.mulf %26, %12 : vector<2x32xf32>
    %30 = arith.mulf %25, %27 : vector<2x32xf32>
    %31 = arith.addf %29, %30 : vector<2x32xf32>
    %32 = math.tanh %31 : vector<2x32xf32>
    %33 = arith.mulf %28, %32 : vector<2x32xf32>
    %34 = arith.truncf %33 : vector<2x32xf32> to vector<2x32xbf16>
    %cst_7 = arith.constant dense<0.000000e+00> : vector<2x128xf32>
    %35 = tpu.matmul %34, %4, %cst_7 {dimension_numbers = #tpu.dot_dimension_numbers<[1], [0], [0], [1], [0, 0, 1, 1], [], []>} : vector<2x32xbf16>, vector<32x128xbf16>, vector<2x128xf32> -> vector<2x128xf32>
    %36 = vector.extract_strided_slice %10 {offsets = [1, 0], sizes = [1, 128], strides = [1, 1]} : vector<16x128xf32> to vector<1x128xf32>
    %37 = vector.extract_strided_slice %10 {offsets = [9, 0], sizes = [1, 128], strides = [1, 1]} : vector<16x128xf32> to vector<1x128xf32>
    %38 = tpu.concatenate %36, %37 in 0 : vector<1x128xf32>, vector<1x128xf32> -> vector<2x128xf32>
    %39 = arith.addf %38, %35 : vector<2x128xf32>
    %40 = arith.negf %39 : vector<2x128xf32>
    %41 = math.exp %40 : vector<2x128xf32>
    %cst_8 = arith.constant 1.000000e+00 : f32
    %42 = vector.broadcast %cst_8 : f32 to vector<2x128xf32>
    %43 = arith.addf %42, %41 : vector<2x128xf32>
    %44 = arith.divf %42, %43 : vector<2x128xf32>
    %45 = math.tanh %39 : vector<2x128xf32>
    %46 = vector.extract_strided_slice %44 {offsets = [0, 0], sizes = [2, 32], strides = [1, 1]} : vector<2x128xf32> to vector<2x32xf32>
    %47 = vector.extract_strided_slice %44 {offsets = [0, 32], sizes = [2, 32], strides = [1, 1]} : vector<2x128xf32> to vector<2x32xf32>
    %48 = vector.extract_strided_slice %45 {offsets = [0, 64], sizes = [2, 32], strides = [1, 1]} : vector<2x128xf32> to vector<2x32xf32>
    %49 = vector.extract_strided_slice %44 {offsets = [0, 96], sizes = [2, 32], strides = [1, 1]} : vector<2x128xf32> to vector<2x32xf32>
    %50 = arith.mulf %47, %31 : vector<2x32xf32>
    %51 = arith.mulf %46, %48 : vector<2x32xf32>
    %52 = arith.addf %50, %51 : vector<2x32xf32>
    %53 = math.tanh %52 : vector<2x32xf32>
    %54 = arith.mulf %49, %53 : vector<2x32xf32>
    %55 = arith.truncf %54 : vector<2x32xf32> to vector<2x32xbf16>
    %cst_9 = arith.constant dense<0.000000e+00> : vector<2x128xf32>
    %56 = tpu.matmul %55, %4, %cst_9 {dimension_numbers = #tpu.dot_dimension_numbers<[1], [0], [0], [1], [0, 0, 1, 1], [], []>} : vector<2x32xbf16>, vector<32x128xbf16>, vector<2x128xf32> -> vector<2x128xf32>
    %57 = vector.extract_strided_slice %10 {offsets = [2, 0], sizes = [1, 128], strides = [1, 1]} : vector<16x128xf32> to vector<1x128xf32>
    %58 = vector.extract_strided_slice %10 {offsets = [10, 0], sizes = [1, 128], strides = [1, 1]} : vector<16x128xf32> to vector<1x128xf32>
    %59 = tpu.concatenate %57, %58 in 0 : vector<1x128xf32>, vector<1x128xf32> -> vector<2x128xf32>
    %60 = arith.addf %59, %56 : vector<2x128xf32>
    %61 = arith.negf %60 : vector<2x128xf32>
    %62 = math.exp %61 : vector<2x128xf32>
    %cst_10 = arith.constant 1.000000e+00 : f32
    %63 = vector.broadcast %cst_10 : f32 to vector<2x128xf32>
    %64 = arith.addf %63, %62 : vector<2x128xf32>
    %65 = arith.divf %63, %64 : vector<2x128xf32>
    %66 = math.tanh %60 : vector<2x128xf32>
    %67 = vector.extract_strided_slice %65 {offsets = [0, 0], sizes = [2, 32], strides = [1, 1]} : vector<2x128xf32> to vector<2x32xf32>
    %68 = vector.extract_strided_slice %65 {offsets = [0, 32], sizes = [2, 32], strides = [1, 1]} : vector<2x128xf32> to vector<2x32xf32>
    %69 = vector.extract_strided_slice %66 {offsets = [0, 64], sizes = [2, 32], strides = [1, 1]} : vector<2x128xf32> to vector<2x32xf32>
    %70 = vector.extract_strided_slice %65 {offsets = [0, 96], sizes = [2, 32], strides = [1, 1]} : vector<2x128xf32> to vector<2x32xf32>
    %71 = arith.mulf %68, %52 : vector<2x32xf32>
    %72 = arith.mulf %67, %69 : vector<2x32xf32>
    %73 = arith.addf %71, %72 : vector<2x32xf32>
    %74 = math.tanh %73 : vector<2x32xf32>
    %75 = arith.mulf %70, %74 : vector<2x32xf32>
    %76 = arith.truncf %75 : vector<2x32xf32> to vector<2x32xbf16>
    %cst_11 = arith.constant dense<0.000000e+00> : vector<2x128xf32>
    %77 = tpu.matmul %76, %4, %cst_11 {dimension_numbers = #tpu.dot_dimension_numbers<[1], [0], [0], [1], [0, 0, 1, 1], [], []>} : vector<2x32xbf16>, vector<32x128xbf16>, vector<2x128xf32> -> vector<2x128xf32>
    %78 = vector.extract_strided_slice %10 {offsets = [3, 0], sizes = [1, 128], strides = [1, 1]} : vector<16x128xf32> to vector<1x128xf32>
    %79 = vector.extract_strided_slice %10 {offsets = [11, 0], sizes = [1, 128], strides = [1, 1]} : vector<16x128xf32> to vector<1x128xf32>
    %80 = tpu.concatenate %78, %79 in 0 : vector<1x128xf32>, vector<1x128xf32> -> vector<2x128xf32>
    %81 = arith.addf %80, %77 : vector<2x128xf32>
    %82 = arith.negf %81 : vector<2x128xf32>
    %83 = math.exp %82 : vector<2x128xf32>
    %cst_12 = arith.constant 1.000000e+00 : f32
    %84 = vector.broadcast %cst_12 : f32 to vector<2x128xf32>
    %85 = arith.addf %84, %83 : vector<2x128xf32>
    %86 = arith.divf %84, %85 : vector<2x128xf32>
    %87 = math.tanh %81 : vector<2x128xf32>
    %88 = vector.extract_strided_slice %86 {offsets = [0, 0], sizes = [2, 32], strides = [1, 1]} : vector<2x128xf32> to vector<2x32xf32>
    %89 = vector.extract_strided_slice %86 {offsets = [0, 32], sizes = [2, 32], strides = [1, 1]} : vector<2x128xf32> to vector<2x32xf32>
    %90 = vector.extract_strided_slice %87 {offsets = [0, 64], sizes = [2, 32], strides = [1, 1]} : vector<2x128xf32> to vector<2x32xf32>
    %91 = vector.extract_strided_slice %86 {offsets = [0, 96], sizes = [2, 32], strides = [1, 1]} : vector<2x128xf32> to vector<2x32xf32>
    %92 = arith.mulf %89, %73 : vector<2x32xf32>
    %93 = arith.mulf %88, %90 : vector<2x32xf32>
    %94 = arith.addf %92, %93 : vector<2x32xf32>
    %95 = math.tanh %94 : vector<2x32xf32>
    %96 = arith.mulf %91, %95 : vector<2x32xf32>
    %97 = arith.truncf %96 : vector<2x32xf32> to vector<2x32xbf16>
    %cst_13 = arith.constant dense<0.000000e+00> : vector<2x128xf32>
    %98 = tpu.matmul %97, %4, %cst_13 {dimension_numbers = #tpu.dot_dimension_numbers<[1], [0], [0], [1], [0, 0, 1, 1], [], []>} : vector<2x32xbf16>, vector<32x128xbf16>, vector<2x128xf32> -> vector<2x128xf32>
    %99 = vector.extract_strided_slice %10 {offsets = [4, 0], sizes = [1, 128], strides = [1, 1]} : vector<16x128xf32> to vector<1x128xf32>
    %100 = vector.extract_strided_slice %10 {offsets = [12, 0], sizes = [1, 128], strides = [1, 1]} : vector<16x128xf32> to vector<1x128xf32>
    %101 = tpu.concatenate %99, %100 in 0 : vector<1x128xf32>, vector<1x128xf32> -> vector<2x128xf32>
    %102 = arith.addf %101, %98 : vector<2x128xf32>
    %103 = arith.negf %102 : vector<2x128xf32>
    %104 = math.exp %103 : vector<2x128xf32>
    %cst_14 = arith.constant 1.000000e+00 : f32
    %105 = vector.broadcast %cst_14 : f32 to vector<2x128xf32>
    %106 = arith.addf %105, %104 : vector<2x128xf32>
    %107 = arith.divf %105, %106 : vector<2x128xf32>
    %108 = math.tanh %102 : vector<2x128xf32>
    %109 = vector.extract_strided_slice %107 {offsets = [0, 0], sizes = [2, 32], strides = [1, 1]} : vector<2x128xf32> to vector<2x32xf32>
    %110 = vector.extract_strided_slice %107 {offsets = [0, 32], sizes = [2, 32], strides = [1, 1]} : vector<2x128xf32> to vector<2x32xf32>
    %111 = vector.extract_strided_slice %108 {offsets = [0, 64], sizes = [2, 32], strides = [1, 1]} : vector<2x128xf32> to vector<2x32xf32>
    %112 = vector.extract_strided_slice %107 {offsets = [0, 96], sizes = [2, 32], strides = [1, 1]} : vector<2x128xf32> to vector<2x32xf32>
    %113 = arith.mulf %110, %94 : vector<2x32xf32>
    %114 = arith.mulf %109, %111 : vector<2x32xf32>
    %115 = arith.addf %113, %114 : vector<2x32xf32>
    %116 = math.tanh %115 : vector<2x32xf32>
    %117 = arith.mulf %112, %116 : vector<2x32xf32>
    %118 = arith.truncf %117 : vector<2x32xf32> to vector<2x32xbf16>
    %cst_15 = arith.constant dense<0.000000e+00> : vector<2x128xf32>
    %119 = tpu.matmul %118, %4, %cst_15 {dimension_numbers = #tpu.dot_dimension_numbers<[1], [0], [0], [1], [0, 0, 1, 1], [], []>} : vector<2x32xbf16>, vector<32x128xbf16>, vector<2x128xf32> -> vector<2x128xf32>
    %120 = vector.extract_strided_slice %10 {offsets = [5, 0], sizes = [1, 128], strides = [1, 1]} : vector<16x128xf32> to vector<1x128xf32>
    %121 = vector.extract_strided_slice %10 {offsets = [13, 0], sizes = [1, 128], strides = [1, 1]} : vector<16x128xf32> to vector<1x128xf32>
    %122 = tpu.concatenate %120, %121 in 0 : vector<1x128xf32>, vector<1x128xf32> -> vector<2x128xf32>
    %123 = arith.addf %122, %119 : vector<2x128xf32>
    %124 = arith.negf %123 : vector<2x128xf32>
    %125 = math.exp %124 : vector<2x128xf32>
    %cst_16 = arith.constant 1.000000e+00 : f32
    %126 = vector.broadcast %cst_16 : f32 to vector<2x128xf32>
    %127 = arith.addf %126, %125 : vector<2x128xf32>
    %128 = arith.divf %126, %127 : vector<2x128xf32>
    %129 = math.tanh %123 : vector<2x128xf32>
    %130 = vector.extract_strided_slice %128 {offsets = [0, 0], sizes = [2, 32], strides = [1, 1]} : vector<2x128xf32> to vector<2x32xf32>
    %131 = vector.extract_strided_slice %128 {offsets = [0, 32], sizes = [2, 32], strides = [1, 1]} : vector<2x128xf32> to vector<2x32xf32>
    %132 = vector.extract_strided_slice %129 {offsets = [0, 64], sizes = [2, 32], strides = [1, 1]} : vector<2x128xf32> to vector<2x32xf32>
    %133 = vector.extract_strided_slice %128 {offsets = [0, 96], sizes = [2, 32], strides = [1, 1]} : vector<2x128xf32> to vector<2x32xf32>
    %134 = arith.mulf %131, %115 : vector<2x32xf32>
    %135 = arith.mulf %130, %132 : vector<2x32xf32>
    %136 = arith.addf %134, %135 : vector<2x32xf32>
    %137 = math.tanh %136 : vector<2x32xf32>
    %138 = arith.mulf %133, %137 : vector<2x32xf32>
    %139 = arith.truncf %138 : vector<2x32xf32> to vector<2x32xbf16>
    %cst_17 = arith.constant dense<0.000000e+00> : vector<2x128xf32>
    %140 = tpu.matmul %139, %4, %cst_17 {dimension_numbers = #tpu.dot_dimension_numbers<[1], [0], [0], [1], [0, 0, 1, 1], [], []>} : vector<2x32xbf16>, vector<32x128xbf16>, vector<2x128xf32> -> vector<2x128xf32>
    %141 = vector.extract_strided_slice %10 {offsets = [6, 0], sizes = [1, 128], strides = [1, 1]} : vector<16x128xf32> to vector<1x128xf32>
    %142 = vector.extract_strided_slice %10 {offsets = [14, 0], sizes = [1, 128], strides = [1, 1]} : vector<16x128xf32> to vector<1x128xf32>
    %143 = tpu.concatenate %141, %142 in 0 : vector<1x128xf32>, vector<1x128xf32> -> vector<2x128xf32>
    %144 = arith.addf %143, %140 : vector<2x128xf32>
    %145 = arith.negf %144 : vector<2x128xf32>
    %146 = math.exp %145 : vector<2x128xf32>
    %cst_18 = arith.constant 1.000000e+00 : f32
    %147 = vector.broadcast %cst_18 : f32 to vector<2x128xf32>
    %148 = arith.addf %147, %146 : vector<2x128xf32>
    %149 = arith.divf %147, %148 : vector<2x128xf32>
    %150 = math.tanh %144 : vector<2x128xf32>
    %151 = vector.extract_strided_slice %149 {offsets = [0, 0], sizes = [2, 32], strides = [1, 1]} : vector<2x128xf32> to vector<2x32xf32>
    %152 = vector.extract_strided_slice %149 {offsets = [0, 32], sizes = [2, 32], strides = [1, 1]} : vector<2x128xf32> to vector<2x32xf32>
    %153 = vector.extract_strided_slice %150 {offsets = [0, 64], sizes = [2, 32], strides = [1, 1]} : vector<2x128xf32> to vector<2x32xf32>
    %154 = vector.extract_strided_slice %149 {offsets = [0, 96], sizes = [2, 32], strides = [1, 1]} : vector<2x128xf32> to vector<2x32xf32>
    %155 = arith.mulf %152, %136 : vector<2x32xf32>
    %156 = arith.mulf %151, %153 : vector<2x32xf32>
    %157 = arith.addf %155, %156 : vector<2x32xf32>
    %158 = math.tanh %157 : vector<2x32xf32>
    %159 = arith.mulf %154, %158 : vector<2x32xf32>
    %160 = arith.truncf %159 : vector<2x32xf32> to vector<2x32xbf16>
    %cst_19 = arith.constant dense<0.000000e+00> : vector<2x128xf32>
    %161 = tpu.matmul %160, %4, %cst_19 {dimension_numbers = #tpu.dot_dimension_numbers<[1], [0], [0], [1], [0, 0, 1, 1], [], []>} : vector<2x32xbf16>, vector<32x128xbf16>, vector<2x128xf32> -> vector<2x128xf32>
    %162 = vector.extract_strided_slice %10 {offsets = [7, 0], sizes = [1, 128], strides = [1, 1]} : vector<16x128xf32> to vector<1x128xf32>
    %163 = vector.extract_strided_slice %10 {offsets = [15, 0], sizes = [1, 128], strides = [1, 1]} : vector<16x128xf32> to vector<1x128xf32>
    %164 = tpu.concatenate %162, %163 in 0 : vector<1x128xf32>, vector<1x128xf32> -> vector<2x128xf32>
    %165 = arith.addf %164, %161 : vector<2x128xf32>
    %166 = arith.negf %165 : vector<2x128xf32>
    %167 = math.exp %166 : vector<2x128xf32>
    %cst_20 = arith.constant 1.000000e+00 : f32
    %168 = vector.broadcast %cst_20 : f32 to vector<2x128xf32>
    %169 = arith.addf %168, %167 : vector<2x128xf32>
    %170 = arith.divf %168, %169 : vector<2x128xf32>
    %171 = math.tanh %165 : vector<2x128xf32>
    %172 = vector.extract_strided_slice %170 {offsets = [0, 0], sizes = [2, 32], strides = [1, 1]} : vector<2x128xf32> to vector<2x32xf32>
    %173 = vector.extract_strided_slice %170 {offsets = [0, 32], sizes = [2, 32], strides = [1, 1]} : vector<2x128xf32> to vector<2x32xf32>
    %174 = vector.extract_strided_slice %171 {offsets = [0, 64], sizes = [2, 32], strides = [1, 1]} : vector<2x128xf32> to vector<2x32xf32>
    %175 = vector.extract_strided_slice %170 {offsets = [0, 96], sizes = [2, 32], strides = [1, 1]} : vector<2x128xf32> to vector<2x32xf32>
    %176 = arith.mulf %173, %157 : vector<2x32xf32>
    %177 = arith.mulf %172, %174 : vector<2x32xf32>
    %178 = arith.addf %176, %177 : vector<2x32xf32>
    %179 = math.tanh %178 : vector<2x32xf32>
    %180 = arith.mulf %175, %179 : vector<2x32xf32>
    %c0_21 = arith.constant 0 : index
    %c0_22 = arith.constant 0 : index
    %181 = vector.load %arg2[%c0_21, %c0_22] : memref<2x32xf32, #tpu.memory_space<vmem>>, vector<2x32xf32>
    tpu.vector_store %arg2[%c0_21, %c0_22], %180 {strides = array<i32>} : memref<2x32xf32, #tpu.memory_space<vmem>>, vector<2x32xf32>,
    return
  }
}

</mosaic_0001>

<llo_original>
// kernel: series_embedding_forward.1
$region0: #{series_embedding_forward.1}
  #allocation0 [shape = 'u32[]', space=smem, size = 0x4, offset = 0x4, fixed_abs, tag = 'smem constant byte address 0x4 - core index']
  #allocation1 [shape = 'u32[144,128]{1,0:T(1,128)}', space=vmem, size = 0x12000, scoped, tag = 'internal scratch']
  %s0 = inlined_call_operand.hbm [shape: f32[16,8], index: 0, kind: input, shape index: {}]
  %s1 = inlined_call_operand.hbm [shape: f32[41,128], index: 1, kind: input, shape index: {}]
  %s2 = inlined_call_operand.hbm [shape: f32[2,32], index: 2, kind: output, shape index: {}]
  %s3 = sld [smem:[#allocation0]]
  $region26: #{series_embedding_forward.1} parent=0
    _
  %s5 = ssub.s32 1, %s3
  %s6 = scalar_select 0, %s5, %s3
  $region1: #{series_embedding_forward.1} parent=0
    #allocation2 [shape = 'u8[8192]{0}', space=vmem, size = 0x2000, scoped, tag = 'input window, operand 0, single buffered']
    #allocation3 [shape = 's32[1]{0}', space=sflag, size = 0x4, scoped, tag = 'scoped memory for series_embedding_forward.1']
    #allocation4 [shape = 's32[1]{0}', space=sflag, size = 0x4, scoped, tag = 'scoped memory for series_embedding_forward.1']
    #allocation5 [shape = 'u8[24576]{0}', space=vmem, size = 0x6000, scoped, tag = 'input window, operand 1, single buffered']
    #allocation6 [shape = 's32[1]{0}', space=sflag, size = 0x4, scoped, tag = 'scoped memory for series_embedding_forward.1']
    #allocation7 [shape = 'u8[1024]{0}', space=vmem, size = 0x400, scoped, tag = 'output window, operand 0, single buffered']
    %7 = vsyncpa [#allocation3], 0
    %8 = vsyncpa [#allocation6], 0
    %9 = vsyncpa [#allocation4], 0
    // Predicated region
    $region2: #{series_embedding_forward.1} parent=1 // pred_check
      _
    $region3: #{series_embedding_forward.1} parent=1 // pred_check_branch
      %11 = sbr.rel (0) target = $region5
    $region4: #{series_embedding_forward.1} parent=1 // pred_region
      %s13 = ssub.s32 256, 256
      %14 = vsyncadd [#allocation3], %s13
      %s15 = sshll.u32 [#allocation2], 4
      %s16 = int_to_ptr.vmem [resolvable:$true] %s15
      %21 = dma.hbm_to_vmem [thread:$0]  %s0, 256, %s16, [#allocation3], 128, 128, 8
    $region5: #{series_embedding_forward.1} parent=1 // pred_fallthru
      _
    // Predicated region
    $region6: #{series_embedding_forward.1} parent=1 // pred_check
      _
    $region7: #{series_embedding_forward.1} parent=1 // pred_check_branch
      %23 = sbr.rel (0) target = $region9
    $region8: #{series_embedding_forward.1} parent=1 // pred_region
      %s25 = ssub.s32 768, 768
      %26 = vsyncadd [#allocation6], %s25
      %s27 = sshll.u32 [#allocation5], 4
      %s28 = int_to_ptr.vmem [resolvable:$true] %s27
      %33 = dma.hbm_to_vmem [thread:$0]  %s1, 768, %s28, [#allocation6], 128, 128, 8
    $region9: #{series_embedding_forward.1} parent=1 // pred_fallthru
      _
    // Predicated region
    $region10: #{series_embedding_forward.1} parent=1 // pred_check
      _
    $region11: #{series_embedding_forward.1} parent=1 // pred_check_branch
      %35 = sbr.rel (0) target = $region13
    $region12: #{series_embedding_forward.1} parent=1 // pred_region
      %36 = dma.done [#allocation3], 256
    $region13: #{series_embedding_forward.1} parent=1 // pred_fallthru
      _
    // Predicated region
    $region14: #{series_embedding_forward.1} parent=1 // pred_check
      _
    $region15: #{series_embedding_forward.1} parent=1 // pred_check_branch
      %38 = sbr.rel (0) target = $region17
    $region16: #{series_embedding_forward.1} parent=1 // pred_region
      %39 = dma.done [#allocation6], 768
    $region17: #{series_embedding_forward.1} parent=1 // pred_fallthru
      _
    %v41 = vld [vmem:[#allocation5] sm:$0xff]
    %v42 = vld [vmem:[#allocation5 + $0x8] sm:$0xff]
    %v43 = vld [vmem:[#allocation5 + $0x10] sm:$0xff]
    %v44 = vld [vmem:[#allocation5 + $0x18] sm:$0xff]
    %v45 = vld [vmem:[#allocation5 + $0x20] sm:$0xff]
    %v46 = vld [vmem:[#allocation5 + $0x28] sm:$0x1]
    %v47 = vpack.c.bf16 %v41, %v41
    %v48 = vpack.c.bf16 %v43, %v42
    %v49 = vpack.c.bf16 %v45, %v44
    %v50 = vld [vmem:[#allocation2] sm:$0xff]
    %v51 = vld [vmem:[#allocation2 + $0x8] sm:$0xff]
    %v52 = vpack.c.bf16 %v51, %v50
    %v53 = vlaneseq
    %v54 = vshrl.u32 %v53, 7
    %v55 = vsub.s32 0, %v54
    %v56 = vrot.slane %v46, %v55
    %vm57 = vcmask 64512
    %v59 = vsel %vm57, %v52, 0
    %vm61 = vcmask 1043456
    %v63 = vsel %vm61, %v47, 0
    %65 = vmatprep.subr.bf16.mxu0 0
    %66 = vmatpush1.bf16.msra.mxu0 0
    %67 = vmatprep.subr.bf16.mxu0 0
    %68 = vmatpush1.bf16.msra.mxu0 0
    %69 = vmatprep.subr.bf16.mxu0 0
    %70 = vmatpush1.bf16.msra.mxu0 0
    %71 = vmatprep.subr.bf16.mxu0 0
    %72 = vmatpush1.bf16.msra.mxu0 0
    %73 = vmatprep.subr.bf16.mxu0 0
    %74 = vmatpush1.bf16.msra.mxu0 0
    %75 = vmatprep.subr.bf16.mxu0 0
    %76 = vmatpush1.bf16.msra.mxu0 0
    %77 = vmatprep.subr.bf16.mxu0 0
    %78 = vmatpush1.bf16.msra.mxu0 0
    %79 = vmatprep.subr.bf16.mxu0 0
    %80 = vmatpush1.bf16.msra.mxu0 %v63
    %81 = vmatprep.subr.bf16.mxu0 0
    %82 = vmatpush2.bf16.msra.mxu0 0
    %83 = vmatprep.subr.bf16.mxu0 0
    %84 = vmatpush2.bf16.msra.mxu0 0
    %85 = vmatprep.subr.bf16.mxu0 0
    %86 = vmatpush2.bf16.msra.mxu0 0
    %87 = vmatprep.subr.bf16.mxu0 0
    %88 = vmatpush2.bf16.msra.mxu0 0
    %89 = vmatprep.subr.bf16.mxu0 0
    %90 = vmatpush2.bf16.msra.mxu0 0
    %91 = vmatprep.subr.bf16.mxu0 0
    %92 = vmatpush2.bf16.msra.mxu0 0
    %93 = vmatprep.subr.bf16.mxu0 0
    %94 = vmatpush2.bf16.msra.mxu0 0
    %95 = vmatprep.subr.bf16.mxu0 0
    %96 = vmatpush2.bf16.msra.mxu0 0
    %97 = vmatprep.mubr.bf16.mxu0 0
    %98 = vmatmul.mubr.bf16.gmra.mxu0 %v59
    %v99 = vpop.f32.mrf.mxu0
    %v100 = vadd.f32 %v56, %v99
    %v101 = vpop.f32.mrf.mxu0
    %v102 = vpop.f32.mrf.mxu0
    %v103 = vadd.f32 %v56, %v102
    %v104 = vpop.f32.mrf.mxu0
    %105 = vdwg.mxu0
    %vm106 = vcmask 261120
    %v108 = vsel %vm106, 0, 0
    %110 = vmatprep.subr.bf16.mxu0 0
    %111 = vmatpush1.bf16.msra.mxu0 0
    %112 = vmatprep.subr.bf16.mxu0 0
    %113 = vmatpush1.bf16.msra.mxu0 0
    %114 = vmatprep.subr.bf16.mxu0 0
    %115 = vmatpush1.bf16.msra.mxu0 0
    %116 = vmatprep.subr.bf16.mxu0 0
    %117 = vmatpush1.bf16.msra.mxu0 0
    %118 = vmatprep.subr.bf16.mxu0 0
    %119 = vmatpush1.bf16.msra.mxu0 0
    %120 = vmatprep.subr.bf16.mxu0 0
    %121 = vmatpush1.bf16.msra.mxu0 0
    %122 = vmatprep.subr.bf16.mxu0 0
    %123 = vmatpush1.bf16.msra.mxu0 %v49
    %124 = vmatprep.subr.bf16.mxu0 0
    %125 = vmatpush1.bf16.msra.mxu0 %v48
    %126 = vmatprep.subr.bf16.mxu0 0
    %127 = vmatpush2.bf16.msra.mxu0 0
    %128 = vmatprep.subr.bf16.mxu0 0
    %129 = vmatpush2.bf16.msra.mxu0 0
    %130 = vmatprep.subr.bf16.mxu0 0
    %131 = vmatpush2.bf16.msra.mxu0 0
    %132 = vmatprep.subr.bf16.mxu0 0
    %133 = vmatpush2.bf16.msra.mxu0 0
    %134 = vmatprep.subr.bf16.mxu0 0
    %135 = vmatpush2.bf16.msra.mxu0 0
    %136 = vmatprep.subr.bf16.mxu0 0
    %137 = vmatpush2.bf16.msra.mxu0 0
    %138 = vmatprep.subr.bf16.mxu0 0
    %139 = vmatpush2.bf16.msra.mxu0 0
    %140 = vmatprep.subr.bf16.mxu0 0
    %141 = vmatpush2.bf16.msra.mxu0 0
    %142 = vmatprep.mubr.bf16.mxu0 0
    %143 = vmatmul.mubr.bf16.gmra.mxu0 %v108
    %v144 = vpop.f32.mrf.mxu0
    %v145 = vadd.f32 0.0, %v144
    %v146 = vpop.f32.mrf.mxu0
    %v147 = vpop.f32.mrf.mxu0
    %v148 = vpop.f32.mrf.mxu0
    %149 = vdwg.mxu0
    %v151 = vrot.slane %v103, 7
    %vm153 = vcmask 1040384
    %v154 = vsel %vm153, %v100, %v151
    %v155 = vadd.f32 %v154, %v145
    %v156 = vxor.u32 %v155, 2147483648
    %v157 = vmul.f32 %v156, 1.442695
    %v158 = vpow.pop %v157
    %v159 = vadd.f32 %v158, 1.0
    %v160 = vrcp.pop %v159
    %v161 = vmul.f32 1.0, %v160
    %v162 = vtanh.pop %v155
    %v163 = vmul.f32 %v161, 0.0
    %165 = vrot.lane.b32.xlu0 %v162, 64
    %v166 = vpop.permute.xlu0 %165
    %v168 = vmul.f32 %v161, %v166
    %170 = vrot.lane.b32.xlu0 %v168, 32
    %v171 = vpop.permute.xlu0 %170
    %v173 = vadd.f32 %v163, %v171
    %v174 = vtanh.pop %v173
    %176 = vrot.lane.b32.xlu0 %v174, 64
    %v177 = vpop.permute.xlu0 %176
    %v179 = vmul.f32 %v161, %v177
    %v180 = vpack.c.bf16 %v179, %v179
    %182 = vrot.lane.b32.xlu0 %v180, 32
    %v183 = vpop.permute.xlu0 %182
    %v185 = vsel %vm106, %v183, 0
    %187 = vmatprep.subr.bf16.mxu0 0
    %188 = vmatpush1.bf16.msra.mxu0 0
    %189 = vmatprep.subr.bf16.mxu0 0
    %190 = vmatpush1.bf16.msra.mxu0 0
    %191 = vmatprep.subr.bf16.mxu0 0
    %192 = vmatpush1.bf16.msra.mxu0 0
    %193 = vmatprep.subr.bf16.mxu0 0
    %194 = vmatpush1.bf16.msra.mxu0 0
    %195 = vmatprep.subr.bf16.mxu0 0
    %196 = vmatpush1.bf16.msra.mxu0 0
    %197 = vmatprep.subr.bf16.mxu0 0
    %198 = vmatpush1.bf16.msra.mxu0 0
    %199 = vmatprep.subr.bf16.mxu0 0
    %200 = vmatpush1.bf16.msra.mxu0 %v49
    %201 = vmatprep.subr.bf16.mxu0 0
    %202 = vmatpush1.bf16.msra.mxu0 %v48
    %203 = vmatprep.subr.bf16.mxu0 0
    %204 = vmatpush2.bf16.msra.mxu0 0
    %205 = vmatprep.subr.bf16.mxu0 0
    %206 = vmatpush2.bf16.msra.mxu0 0
    %207 = vmatprep.subr.bf16.mxu0 0
    %208 = vmatpush2.bf16.msra.mxu0 0
    %209 = vmatprep.subr.bf16.mxu0 0
    %210 = vmatpush2.bf16.msra.mxu0 0
    %211 = vmatprep.subr.bf16.mxu0 0
    %212 = vmatpush2.bf16.msra.mxu0 0
    %213 = vmatprep.subr.bf16.mxu0 0
    %214 = vmatpush2.bf16.msra.mxu0 0
    %215 = vmatprep.subr.bf16.mxu0 0
    %216 = vmatpush2.bf16.msra.mxu0 0
    %217 = vmatprep.subr.bf16.mxu0 0
    %218 = vmatpush2.bf16.msra.mxu0 0
    %219 = vmatprep.mubr.bf16.mxu0 0
    %220 = vmatmul.mubr.bf16.gmra.mxu0 %v185
    %v221 = vpop.f32.mrf.mxu0
    %v222 = vadd.f32 0.0, %v221
    %v223 = vpop.f32.mrf.mxu0
    %v224 = vpop.f32.mrf.mxu0
    %v225 = vpop.f32.mrf.mxu0
    %226 = vdwg.mxu0
    %v228 = vrot.slane %v100, 1
    %v230 = vsel %vm153, %v228, %v103
    %v231 = vadd.f32 %v230, %v222
    %v232 = vxor.u32 %v231, 2147483648
    %v233 = vmul.f32 %v232, 1.442695
    %v234 = vpow.pop %v233
    %v235 = vadd.f32 %v234, 1.0
    %v236 = vrcp.pop %v235
    %v237 = vmul.f32 1.0, %v236
    %v238 = vtanh.pop %v231
    %v239 = vmul.f32 %v237, %v173
    %241 = vrot.lane.b32.xlu0 %v238, 64
    %v242 = vpop.permute.xlu0 %241
    %v244 = vmul.f32 %v237, %v242
    %246 = vrot.lane.b32.xlu0 %v244, 32
    %v247 = vpop.permute.xlu0 %246
    %v249 = vadd.f32 %v239, %v247
    %v250 = vtanh.pop %v249
    %252 = vrot.lane.b32.xlu0 %v250, 64
    %v253 = vpop.permute.xlu0 %252
    %v255 = vmul.f32 %v237, %v253
    %v256 = vpack.c.bf16 %v255, %v255
    %258 = vrot.lane.b32.xlu0 %v256, 32
    %v259 = vpop.permute.xlu0 %258
    %v261 = vsel %vm106, %v259, 0
    %263 = vmatprep.subr.bf16.mxu0 0
    %264 = vmatpush1.bf16.msra.mxu0 0
    %265 = vmatprep.subr.bf16.mxu0 0
    %266 = vmatpush1.bf16.msra.mxu0 0
    %267 = vmatprep.subr.bf16.mxu0 0
    %268 = vmatpush1.bf16.msra.mxu0 0
    %269 = vmatprep.subr.bf16.mxu0 0
    %270 = vmatpush1.bf16.msra.mxu0 0
    %271 = vmatprep.subr.bf16.mxu0 0
    %272 = vmatpush1.bf16.msra.mxu0 0
    %273 = vmatprep.subr.bf16.mxu0 0
    %274 = vmatpush1.bf16.msra.mxu0 0
    %275 = vmatprep.subr.bf16.mxu0 0
    %276 = vmatpush1.bf16.msra.mxu0 %v49
    %277 = vmatprep.subr.bf16.mxu0 0
    %278 = vmatpush1.bf16.msra.mxu0 %v48
    %279 = vmatprep.subr.bf16.mxu0 0
    %280 = vmatpush2.bf16.msra.mxu0 0
    %281 = vmatprep.subr.bf16.mxu0 0
    %282 = vmatpush2.bf16.msra.mxu0 0
    %283 = vmatprep.subr.bf16.mxu0 0
    %284 = vmatpush2.bf16.msra.mxu0 0
    %285 = vmatprep.subr.bf16.mxu0 0
    %286 = vmatpush2.bf16.msra.mxu0 0
    %287 = vmatprep.subr.bf16.mxu0 0
    %288 = vmatpush2.bf16.msra.mxu0 0
    %289 = vmatprep.subr.bf16.mxu0 0
    %290 = vmatpush2.bf16.msra.mxu0 0
    %291 = vmatprep.subr.bf16.mxu0 0
    %292 = vmatpush2.bf16.msra.mxu0 0
    %293 = vmatprep.subr.bf16.mxu0 0
    %294 = vmatpush2.bf16.msra.mxu0 0
    %295 = vmatprep.mubr.bf16.mxu0 0
    %296 = vmatmul.mubr.bf16.gmra.mxu0 %v261
    %v297 = vpop.f32.mrf.mxu0
    %v298 = vadd.f32 0.0, %v297
    %v299 = vpop.f32.mrf.mxu0
    %v300 = vpop.f32.mrf.mxu0
    %v301 = vpop.f32.mrf.mxu0
    %302 = vdwg.mxu0
    %v303 = vrot.slane %v100, 2
    %v305 = vrot.slane %v103, 1
    %v307 = vsel %vm153, %v303, %v305
    %v308 = vadd.f32 %v307, %v298
    %v309 = vxor.u32 %v308, 2147483648
    %v310 = vmul.f32 %v309, 1.442695
    %v311 = vpow.pop %v310
    %v312 = vadd.f32 %v311, 1.0
    %v313 = vrcp.pop %v312
    %v314 = vmul.f32 1.0, %v313
    %v315 = vtanh.pop %v308
    %v316 = vmul.f32 %v314, %v249
    %318 = vrot.lane.b32.xlu0 %v315, 64
    %v319 = vpop.permute.xlu0 %318
    %v321 = vmul.f32 %v314, %v319
    %323 = vrot.lane.b32.xlu0 %v321, 32
    %v324 = vpop.permute.xlu0 %323
    %v326 = vadd.f32 %v316, %v324
    %v327 = vtanh.pop %v326
    %329 = vrot.lane.b32.xlu0 %v327, 64
    %v330 = vpop.permute.xlu0 %329
    %v332 = vmul.f32 %v314, %v330
    %v333 = vpack.c.bf16 %v332, %v332
    %335 = vrot.lane.b32.xlu0 %v333, 32
    %v336 = vpop.permute.xlu0 %335
    %v338 = vsel %vm106, %v336, 0
    %340 = vmatprep.subr.bf16.mxu0 0
    %341 = vmatpush1.bf16.msra.mxu0 0
    %342 = vmatprep.subr.bf16.mxu0 0
    %343 = vmatpush1.bf16.msra.mxu0 0
    %344 = vmatprep.subr.bf16.mxu0 0
    %345 = vmatpush1.bf16.msra.mxu0 0
    %346 = vmatprep.subr.bf16.mxu0 0
    %347 = vmatpush1.bf16.msra.mxu0 0
    %348 = vmatprep.subr.bf16.mxu0 0
    %349 = vmatpush1.bf16.msra.mxu0 0
    %350 = vmatprep.subr.bf16.mxu0 0
    %351 = vmatpush1.bf16.msra.mxu0 0
    %352 = vmatprep.subr.bf16.mxu0 0
    %353 = vmatpush1.bf16.msra.mxu0 %v49
    %354 = vmatprep.subr.bf16.mxu0 0
    %355 = vmatpush1.bf16.msra.mxu0 %v48
    %356 = vmatprep.subr.bf16.mxu0 0
    %357 = vmatpush2.bf16.msra.mxu0 0
    %358 = vmatprep.subr.bf16.mxu0 0
    %359 = vmatpush2.bf16.msra.mxu0 0
    %360 = vmatprep.subr.bf16.mxu0 0
    %361 = vmatpush2.bf16.msra.mxu0 0
    %362 = vmatprep.subr.bf16.mxu0 0
    %363 = vmatpush2.bf16.msra.mxu0 0
    %364 = vmatprep.subr.bf16.mxu0 0
    %365 = vmatpush2.bf16.msra.mxu0 0
    %366 = vmatprep.subr.bf16.mxu0 0
    %367 = vmatpush2.bf16.msra.mxu0 0
    %368 = vmatprep.subr.bf16.mxu0 0
    %369 = vmatpush2.bf16.msra.mxu0 0
    %370 = vmatprep.subr.bf16.mxu0 0
    %371 = vmatpush2.bf16.msra.mxu0 0
    %372 = vmatprep.mubr.bf16.mxu0 0
    %373 = vmatmul.mubr.bf16.gmra.mxu0 %v338
    %v374 = vpop.f32.mrf.mxu0
    %v375 = vadd.f32 0.0, %v374
    %v376 = vpop.f32.mrf.mxu0
    %v377 = vpop.f32.mrf.mxu0
    %v378 = vpop.f32.mrf.mxu0
    %379 = vdwg.mxu0
    %v380 = vrot.slane %v100, 3
    %v382 = vrot.slane %v103, 2
    %v384 = vsel %vm153, %v380, %v382
    %v385 = vadd.f32 %v384, %v375
    %v386 = vxor.u32 %v385, 2147483648
    %v387 = vmul.f32 %v386, 1.442695
    %v388 = vpow.pop %v387
    %v389 = vadd.f32 %v388, 1.0
    %v390 = vrcp.pop %v389
    %v391 = vmul.f32 1.0, %v390
    %v392 = vtanh.pop %v385
    %v393 = vmul.f32 %v391, %v326
    %395 = vrot.lane.b32.xlu0 %v392, 64
    %v396 = vpop.permute.xlu0 %395
    %v398 = vmul.f32 %v391, %v396
    %400 = vrot.lane.b32.xlu0 %v398, 32
    %v401 = vpop.permute.xlu0 %400
    %v403 = vadd.f32 %v393, %v401
    %v404 = vtanh.pop %v403
    %406 = vrot.lane.b32.xlu0 %v404, 64
    %v407 = vpop.permute.xlu0 %406
    %v409 = vmul.f32 %v391, %v407
    %v410 = vpack.c.bf16 %v409, %v409
    %412 = vrot.lane.b32.xlu0 %v410, 32
    %v413 = vpop.permute.xlu0 %412
    %v415 = vsel %vm106, %v413, 0
    %417 = vmatprep.subr.bf16.mxu0 0
    %418 = vmatpush1.bf16.msra.mxu0 0
    %419 = vmatprep.subr.bf16.mxu0 0
    %420 = vmatpush1.bf16.msra.mxu0 0
    %421 = vmatprep.subr.bf16.mxu0 0
    %422 = vmatpush1.bf16.msra.mxu0 0
    %423 = vmatprep.subr.bf16.mxu0 0
    %424 = vmatpush1.bf16.msra.mxu0 0
    %425 = vmatprep.subr.bf16.mxu0 0
    %426 = vmatpush1.bf16.msra.mxu0 0
    %427 = vmatprep.subr.bf16.mxu0 0
    %428 = vmatpush1.bf16.msra.mxu0 0
    %429 = vmatprep.subr.bf16.mxu0 0
    %430 = vmatpush1.bf16.msra.mxu0 %v49
    %431 = vmatprep.subr.bf16.mxu0 0
    %432 = vmatpush1.bf16.msra.mxu0 %v48
    %433 = vmatprep.subr.bf16.mxu0 0
    %434 = vmatpush2.bf16.msra.mxu0 0
    %435 = vmatprep.subr.bf16.mxu0 0
    %436 = vmatpush2.bf16.msra.mxu0 0
    %437 = vmatprep.subr.bf16.mxu0 0
    %438 = vmatpush2.bf16.msra.mxu0 0
    %439 = vmatprep.subr.bf16.mxu0 0
    %440 = vmatpush2.bf16.msra.mxu0 0
    %441 = vmatprep.subr.bf16.mxu0 0
    %442 = vmatpush2.bf16.msra.mxu0 0
    %443 = vmatprep.subr.bf16.mxu0 0
    %444 = vmatpush2.bf16.msra.mxu0 0
    %445 = vmatprep.subr.bf16.mxu0 0
    %446 = vmatpush2.bf16.msra.mxu0 0
    %447 = vmatprep.subr.bf16.mxu0 0
    %448 = vmatpush2.bf16.msra.mxu0 0
    %449 = vmatprep.mubr.bf16.mxu0 0
    %450 = vmatmul.mubr.bf16.gmra.mxu0 %v415
    %v451 = vpop.f32.mrf.mxu0
    %v452 = vadd.f32 0.0, %v451
    %v453 = vpop.f32.mrf.mxu0
    %v454 = vpop.f32.mrf.mxu0
    %v455 = vpop.f32.mrf.mxu0
    %456 = vdwg.mxu0
    %v457 = vrot.slane %v100, 4
    %v459 = vrot.slane %v103, 3
    %v461 = vsel %vm153, %v457, %v459
    %v462 = vadd.f32 %v461, %v452
    %v463 = vxor.u32 %v462, 2147483648
    %v464 = vmul.f32 %v463, 1.442695
    %v465 = vpow.pop %v464
    %v466 = vadd.f32 %v465, 1.0
    %v467 = vrcp.pop %v466
    %v468 = vmul.f32 1.0, %v467
    %v469 = vtanh.pop %v462
    %v470 = vmul.f32 %v468, %v403
    %472 = vrot.lane.b32.xlu0 %v469, 64
    %v473 = vpop.permute.xlu0 %472
    %v475 = vmul.f32 %v468, %v473
    %477 = vrot.lane.b32.xlu0 %v475, 32
    %v478 = vpop.permute.xlu0 %477
    %v480 = vadd.f32 %v470, %v478
    %v481 = vtanh.pop %v480
    %483 = vrot.lane.b32.xlu0 %v481, 64
    %v484 = vpop.permute.xlu0 %483
    %v486 = vmul.f32 %v468, %v484
    %v487 = vpack.c.bf16 %v486, %v486
    %489 = vrot.lane.b32.xlu0 %v487, 32
    %v490 = vpop.permute.xlu0 %489
    %v492 = vsel %vm106, %v490, 0
    %494 = vmatprep.subr.bf16.mxu0 0
    %495 = vmatpush1.bf16.msra.mxu0 0
    %496 = vmatprep.subr.bf16.mxu0 0
    %497 = vmatpush1.bf16.msra.mxu0 0
    %498 = vmatprep.subr.bf16.mxu0 0
    %499 = vmatpush1.bf16.msra.mxu0 0
    %500 = vmatprep.subr.bf16.mxu0 0
    %501 = vmatpush1.bf16.msra.mxu0 0
    %502 = vmatprep.subr.bf16.mxu0 0
    %503 = vmatpush1.bf16.msra.mxu0 0
    %504 = vmatprep.subr.bf16.mxu0 0
    %505 = vmatpush1.bf16.msra.mxu0 0
    %506 = vmatprep.subr.bf16.mxu0 0
    %507 = vmatpush1.bf16.msra.mxu0 %v49
    %508 = vmatprep.subr.bf16.mxu0 0
    %509 = vmatpush1.bf16.msra.mxu0 %v48
    %510 = vmatprep.subr.bf16.mxu0 0
    %511 = vmatpush2.bf16.msra.mxu0 0
    %512 = vmatprep.subr.bf16.mxu0 0
    %513 = vmatpush2.bf16.msra.mxu0 0
    %514 = vmatprep.subr.bf16.mxu0 0
    %515 = vmatpush2.bf16.msra.mxu0 0
    %516 = vmatprep.subr.bf16.mxu0 0
    %517 = vmatpush2.bf16.msra.mxu0 0
    %518 = vmatprep.subr.bf16.mxu0 0
    %519 = vmatpush2.bf16.msra.mxu0 0
    %520 = vmatprep.subr.bf16.mxu0 0
    %521 = vmatpush2.bf16.msra.mxu0 0
    %522 = vmatprep.subr.bf16.mxu0 0
    %523 = vmatpush2.bf16.msra.mxu0 0
    %524 = vmatprep.subr.bf16.mxu0 0
    %525 = vmatpush2.bf16.msra.mxu0 0
    %526 = vmatprep.mubr.bf16.mxu0 0
    %527 = vmatmul.mubr.bf16.gmra.mxu0 %v492
    %v528 = vpop.f32.mrf.mxu0
    %v529 = vadd.f32 0.0, %v528
    %v530 = vpop.f32.mrf.mxu0
    %v531 = vpop.f32.mrf.mxu0
    %v532 = vpop.f32.mrf.mxu0
    %533 = vdwg.mxu0
    %v534 = vrot.slane %v100, 5
    %v536 = vrot.slane %v103, 4
    %v538 = vsel %vm153, %v534, %v536
    %v539 = vadd.f32 %v538, %v529
    %v540 = vxor.u32 %v539, 2147483648
    %v541 = vmul.f32 %v540, 1.442695
    %v542 = vpow.pop %v541
    %v543 = vadd.f32 %v542, 1.0
    %v544 = vrcp.pop %v543
    %v545 = vmul.f32 1.0, %v544
    %v546 = vtanh.pop %v539
    %v547 = vmul.f32 %v545, %v480
    %549 = vrot.lane.b32.xlu0 %v546, 64
    %v550 = vpop.permute.xlu0 %549
    %v552 = vmul.f32 %v545, %v550
    %554 = vrot.lane.b32.xlu0 %v552, 32
    %v555 = vpop.permute.xlu0 %554
    %v557 = vadd.f32 %v547, %v555
    %v558 = vtanh.pop %v557
    %560 = vrot.lane.b32.xlu0 %v558, 64
    %v561 = vpop.permute.xlu0 %560
    %v563 = vmul.f32 %v545, %v561
    %v564 = vpack.c.bf16 %v563, %v563
    %566 = vrot.lane.b32.xlu0 %v564, 32
    %v567 = vpop.permute.xlu0 %566
    %v569 = vsel %vm106, %v567, 0
    %571 = vmatprep.subr.bf16.mxu0 0
    %572 = vmatpush1.bf16.msra.mxu0 0
    %573 = vmatprep.subr.bf16.mxu0 0
    %574 = vmatpush1.bf16.msra.mxu0 0
    %575 = vmatprep.subr.bf16.mxu0 0
    %576 = vmatpush1.bf16.msra.mxu0 0
    %577 = vmatprep.subr.bf16.mxu0 0
    %578 = vmatpush1.bf16.msra.mxu0 0
    %579 = vmatprep.subr.bf16.mxu0 0
    %580 = vmatpush1.bf16.msra.mxu0 0
    %581 = vmatprep.subr.bf16.mxu0 0
    %582 = vmatpush1.bf16.msra.mxu0 0
    %583 = vmatprep.subr.bf16.mxu0 0
    %584 = vmatpush1.bf16.msra.mxu0 %v49
    %585 = vmatprep.subr.bf16.mxu0 0
    %586 = vmatpush1.bf16.msra.mxu0 %v48
    %587 = vmatprep.subr.bf16.mxu0 0
    %588 = vmatpush2.bf16.msra.mxu0 0
    %589 = vmatprep.subr.bf16.mxu0 0
    %590 = vmatpush2.bf16.msra.mxu0 0
    %591 = vmatprep.subr.bf16.mxu0 0
    %592 = vmatpush2.bf16.msra.mxu0 0
    %593 = vmatprep.subr.bf16.mxu0 0
    %594 = vmatpush2.bf16.msra.mxu0 0
    %595 = vmatprep.subr.bf16.mxu0 0
    %596 = vmatpush2.bf16.msra.mxu0 0
    %597 = vmatprep.subr.bf16.mxu0 0
    %598 = vmatpush2.bf16.msra.mxu0 0
    %599 = vmatprep.subr.bf16.mxu0 0
    %600 = vmatpush2.bf16.msra.mxu0 0
    %601 = vmatprep.subr.bf16.mxu0 0
    %602 = vmatpush2.bf16.msra.mxu0 0
    %603 = vmatprep.mubr.bf16.mxu0 0
    %604 = vmatmul.mubr.bf16.gmra.mxu0 %v569
    %v605 = vpop.f32.mrf.mxu0
    %v606 = vadd.f32 0.0, %v605
    %v607 = vpop.f32.mrf.mxu0
    %v608 = vpop.f32.mrf.mxu0
    %v609 = vpop.f32.mrf.mxu0
    %610 = vdwg.mxu0
    %v611 = vrot.slane %v100, 6
    %v613 = vrot.slane %v103, 5
    %v615 = vsel %vm153, %v611, %v613
    %v616 = vadd.f32 %v615, %v606
    %v617 = vxor.u32 %v616, 2147483648
    %v618 = vmul.f32 %v617, 1.442695
    %v619 = vpow.pop %v618
    %v620 = vadd.f32 %v619, 1.0
    %v621 = vrcp.pop %v620
    %v622 = vmul.f32 1.0, %v621
    %v623 = vtanh.pop %v616
    %v624 = vmul.f32 %v622, %v557
    %626 = vrot.lane.b32.xlu0 %v623, 64
    %v627 = vpop.permute.xlu0 %626
    %v629 = vmul.f32 %v622, %v627
    %631 = vrot.lane.b32.xlu0 %v629, 32
    %v632 = vpop.permute.xlu0 %631
    %v634 = vadd.f32 %v624, %v632
    %v635 = vtanh.pop %v634
    %637 = vrot.lane.b32.xlu0 %v635, 64
    %v638 = vpop.permute.xlu0 %637
    %v640 = vmul.f32 %v622, %v638
    %v641 = vpack.c.bf16 %v640, %v640
    %643 = vrot.lane.b32.xlu0 %v641, 32
    %v644 = vpop.permute.xlu0 %643
    %v646 = vsel %vm106, %v644, 0
    %648 = vmatprep.subr.bf16.mxu0 0
    %649 = vmatpush1.bf16.msra.mxu0 0
    %650 = vmatprep.subr.bf16.mxu0 0
    %651 = vmatpush1.bf16.msra.mxu0 0
    %652 = vmatprep.subr.bf16.mxu0 0
    %653 = vmatpush1.bf16.msra.mxu0 0
    %654 = vmatprep.subr.bf16.mxu0 0
    %655 = vmatpush1.bf16.msra.mxu0 0
    %656 = vmatprep.subr.bf16.mxu0 0
    %657 = vmatpush1.bf16.msra.mxu0 0
    %658 = vmatprep.subr.bf16.mxu0 0
    %659 = vmatpush1.bf16.msra.mxu0 0
    %660 = vmatprep.subr.bf16.mxu0 0
    %661 = vmatpush1.bf16.msra.mxu0 %v49
    %662 = vmatprep.subr.bf16.mxu0 0
    %663 = vmatpush1.bf16.msra.mxu0 %v48
    %664 = vmatprep.subr.bf16.mxu0 0
    %665 = vmatpush2.bf16.msra.mxu0 0
    %666 = vmatprep.subr.bf16.mxu0 0
    %667 = vmatpush2.bf16.msra.mxu0 0
    %668 = vmatprep.subr.bf16.mxu0 0
    %669 = vmatpush2.bf16.msra.mxu0 0
    %670 = vmatprep.subr.bf16.mxu0 0
    %671 = vmatpush2.bf16.msra.mxu0 0
    %672 = vmatprep.subr.bf16.mxu0 0
    %673 = vmatpush2.bf16.msra.mxu0 0
    %674 = vmatprep.subr.bf16.mxu0 0
    %675 = vmatpush2.bf16.msra.mxu0 0
    %676 = vmatprep.subr.bf16.mxu0 0
    %677 = vmatpush2.bf16.msra.mxu0 0
    %678 = vmatprep.subr.bf16.mxu0 0
    %679 = vmatpush2.bf16.msra.mxu0 0
    %680 = vmatprep.mubr.bf16.mxu0 0
    %681 = vmatmul.mubr.bf16.gmra.mxu0 %v646
    %v682 = vpop.f32.mrf.mxu0
    %v683 = vadd.f32 0.0, %v682
    %v684 = vpop.f32.mrf.mxu0
    %v685 = vpop.f32.mrf.mxu0
    %v686 = vpop.f32.mrf.mxu0
    %687 = vdwg.mxu0
    %v688 = vrot.slane %v100, 7
    %v690 = vrot.slane %v103, 6
    %v692 = vsel %vm153, %v688, %v690
    %v693 = vadd.f32 %v692, %v683
    %v694 = vxor.u32 %v693, 2147483648
    %v695 = vmul.f32 %v694, 1.442695
    %v696 = vpow.pop %v695
    %v697 = vadd.f32 %v696, 1.0
    %v698 = vrcp.pop %v697
    %v699 = vmul.f32 1.0, %v698
    %v700 = vtanh.pop %v693
    %v701 = vmul.f32 %v699, %v634
    %703 = vrot.lane.b32.xlu0 %v700, 64
    %v704 = vpop.permute.xlu0 %703
    %v706 = vmul.f32 %v699, %v704
    %708 = vrot.lane.b32.xlu0 %v706, 32
    %v709 = vpop.permute.xlu0 %708
    %v711 = vadd.f32 %v701, %v709
    %v712 = vtanh.pop %v711
    %714 = vrot.lane.b32.xlu0 %v712, 64
    %v715 = vpop.permute.xlu0 %714
    %v717 = vmul.f32 %v699, %v715
    %719 = vrot.lane.b32.xlu0 %v717, 32
    %v720 = vpop.permute.xlu0 %719
    %vm722 = vcmask 254976
    %723 = vst.msk [vmem:[#allocation7] sm:$0x3] %vm722, %v720
    // Predicated region
    $region18: #{series_embedding_forward.1} parent=1 // pred_check
      _
    $region19: #{series_embedding_forward.1} parent=1 // pred_check_branch
      %725 = sbr.rel (0) target = $region21
    $region20: #{series_embedding_forward.1} parent=1 // pred_region
      %s727 = ssub.s32 32, 32
      %728 = vsyncadd [#allocation4], %s727
      %s730 = sshll.u32 [#allocation7], 4
      %s731 = int_to_ptr.vmem [resolvable:$true] %s730
      %733 = dma.vmem_to_hbm [thread:$0]  %s731, 32, %s2, [#allocation4]
    $region21: #{series_embedding_forward.1} parent=1 // pred_fallthru
      _
    // Predicated region
    $region22: #{series_embedding_forward.1} parent=1 // pred_check
      _
    $region23: #{series_embedding_forward.1} parent=1 // pred_check_branch
      %735 = sbr.rel (0) target = $region25
    $region24: #{series_embedding_forward.1} parent=1 // pred_region
      %736 = dma.done [#allocation4], 32
    $region25: #{series_embedding_forward.1} parent=1 // pred_fallthru
      _
    %737 = vsyncpa [#allocation3], 1
    %738 = vsyncpa [#allocation6], 1
    %739 = vsyncpa [#allocation4], 1

</llo_original>
